<compile_context>
chip_gen: v7x
topology: tpu7x:2x2x1
jax: 0.10.0
libtpu: 0.0.40
codegen_flags: <defaults>
</compile_context>

<pallas_src>
import functools

import jax
import jax.numpy as jnp
from jax.experimental import pallas as pl
from jax.experimental.pallas import tpu as pltpu


def _round_up(x, m):
    return ((x + m - 1) // m) * m


def _linear_kernel(x_ref, w_ref, b_ref, o_ref, acc_ref, *,
                   row_chunk, ragged_f, n_feature, block_f):
    """One (TB, TF) tile of y = x @ W^T + b, accumulated over the F grid axis."""
    j = pl.program_id(1)                       # feature (reduction) step

    @pl.when(j == 0)
    def _init():
        acc_ref[...] = jnp.zeros_like(acc_ref)

    w = w_ref[...].astype(jnp.float32)         # (1, TF), resident-ish weight row
    if ragged_f:
        # Number of valid feature columns in this block (last block may be
        # ragged: OOB columns of the x block hold stale VMEM and must be zeroed
        # before the reduction).
        valid = n_feature - j * block_f

    def partial_sums(xs):
        xs = xs.astype(jnp.float32)            # bf16 -> f32 upcast if needed
        if ragged_f:
            col = jax.lax.broadcasted_iota(jnp.int32, xs.shape, 1)
            xs = jnp.where(col < valid, xs, 0.0)
        # VPU multiply + XLU lane reduce -> (rows, 1) f32 partial sums.
        return jnp.sum(xs * w, axis=-1, keepdims=True)

    tb = x_ref.shape[0]
    n_chunks = tb // row_chunk                 # static; tb % row_chunk == 0

    if n_chunks == 1:
        acc_ref[...] += partial_sums(x_ref[...])
    else:
        # Row-chunked streaming reduction: keeps the x*w temporary bounded to
        # ~64 KiB of vregs instead of materializing the whole (TB, TF) product.
        def body(c, carry):
            r0 = pl.multiple_of(c * row_chunk, row_chunk)
            acc_ref[pl.ds(r0, row_chunk), :] += partial_sums(
                x_ref[pl.ds(r0, row_chunk), :])
            return carry

        jax.lax.fori_loop(0, n_chunks, body, 0)

    @pl.when(j == pl.num_programs(1) - 1)
    def _finalize():
        o_ref[...] = (acc_ref[...] + b_ref[0, 0]).astype(o_ref.dtype)


def _plan(B, F, x_itemsize, *, block_b=None, block_f=None):
    """Generation-aware tile plan: batch tile, feature tile, row chunk, VMEM limit."""
    try:
        info = pltpu.get_tpu_info()
        vmem_cap = int(getattr(info, "vmem_capacity_bytes", 0)) or (64 << 20)
    except Exception:
        vmem_cap = 64 << 20                    # conservative (v7x-like) fallback

    # Working-set budget for the pipelined buffers (x double-buffered, padded
    # (TB,1) out double-buffered, padded (TB,1) f32 accumulator).
    v_work = max(16 << 20, min(40 << 20, vmem_cap // 3))
    b_pad = _round_up(B, 128)

    def bytes_per_row(tf):
        return 2 * tf * x_itemsize + 2 * 128 * x_itemsize + 128 * 4

    # ---- feature (reduction) tiling ---------------------------------------
    if block_f is not None:
        tf = int(block_f)
        assert tf == F or tf % 128 == 0, "block_f must be F or a multiple of 128"
    elif v_work // bytes_per_row(F) >= 256:
        tf = F                                  # full-F rows: best (contiguous) DMA
    else:
        # F too large to keep >=256 full rows per block: tile the reduction.
        tb0 = min(512, b_pad)
        tf = ((v_work // tb0 - 2 * 128 * x_itemsize - 512) // (2 * x_itemsize))
        tf = max(128, min((tf // 128) * 128, _round_up(F, 128)))
        if tf >= F:
            tf = F
    grid_f = -(-F // tf)
    f_pad = grid_f * tf

    # ---- batch tiling -------------------------------------------------------
    if block_b is not None:
        tb = max(128, (int(block_b) // 128) * 128)
    else:
        tb = (v_work // bytes_per_row(tf)) // 128 * 128
        tb = max(128, min(tb, b_pad))
        # Keep >=2 batch blocks (4 for big batches) so v7x's 2 TensorCores both
        # get work and the pipeline has something to double-buffer.
        if b_pad >= 256:
            target_blocks = 2 if b_pad <= 8192 else 4
            tb = min(tb, max(128, _round_up(-(-B // target_blocks), 128)))
    grid_b = -(-B // tb)

    # ---- in-kernel row chunking --------------------------------------------
    if tb * tf * x_itemsize <= (128 << 10):
        row_chunk = tb
    else:
        row_chunk = max(8, min(tb, ((64 << 10) // (tf * x_itemsize)) // 8 * 8))
        while tb % row_chunk:
            row_chunk -= 8

    est = tb * bytes_per_row(tf) + 2 * 8 * _round_up(tf, 128) * 4 + (1 << 20)
    vmem_limit = int(min(max(est * 13 // 10, 16 << 20), vmem_cap * 7 // 10))

    return dict(tb=tb, tf=tf, grid_b=grid_b, grid_f=grid_f, f_pad=f_pad,
                row_chunk=row_chunk, vmem_limit=vmem_limit)


def linear_net_forward(x, weight, bias, *, block_b=None, block_f=None):
    """x: (B, F) f32/bf16, weight: (1, F), bias: (1,). Returns (B, 1) in x.dtype."""
    B, F = x.shape
    assert weight.shape[-1] == F
    p = _plan(B, F, x.dtype.itemsize, block_b=block_b, block_f=block_f)
    tb, tf = p["tb"], p["tf"]

    w = weight.reshape(1, F).astype(jnp.float32)
    if p["f_pad"] != F:
        # Zero-pad the (tiny) weight so its feature blocks are never ragged.
        w = jnp.pad(w, ((0, 0), (0, p["f_pad"] - F)))
    b2d = bias.reshape(1, 1).astype(jnp.float32)

    kernel = functools.partial(
        _linear_kernel,
        row_chunk=p["row_chunk"],
        ragged_f=(F % tf != 0),
        n_feature=F,
        block_f=tf,
    )

    return pl.pallas_call(
        kernel,
        out_shape=jax.ShapeDtypeStruct((B, 1), x.dtype),
        grid=(p["grid_b"], p["grid_f"]),
        in_specs=[
            pl.BlockSpec((tb, tf), lambda i, j: (i, j)),            # x: streamed tiles
            pl.BlockSpec((1, tf), lambda i, j: (0, j)),             # weight row
            pl.BlockSpec(memory_space=pltpu.MemorySpace.SMEM),      # bias scalar
        ],
        out_specs=pl.BlockSpec((tb, 1), lambda i, j: (i, 0)),       # resident across j
        scratch_shapes=[pltpu.VMEM((tb, 1), jnp.float32)],          # f32 accumulator
        compiler_params=pltpu.CompilerParams(
            dimension_semantics=("parallel", "arbitrary"),
            vmem_limit_bytes=p["vmem_limit"],
        ),
    )(x, w, b2d)


if __name__ == "__main__":
    key = jax.random.PRNGKey(0)

    def make_case(k, B, F, dtype=jnp.float32):
        kx, kw, kb = jax.random.split(k, 3)
        bound = 1.0 / (F ** 0.5)
        x = jax.random.normal(kx, (B, F), dtype=jnp.float32).astype(dtype)
        # Deterministic init mimicking nn.Linear default: U(-1/sqrt(F), 1/sqrt(F)).
        w = jax.random.uniform(kw, (1, F), jnp.float32, -bound, bound)
        b = jax.random.uniform(kb, (1,), jnp.float32, -bound, bound)
        return x, w, b

    def ref(x, w, b):
        # Exact-f32 elementwise reference (avoids MXU default-precision noise).
        return jnp.sum(x.astype(jnp.float32) * w, axis=-1, keepdims=True) + b

    keys = jax.random.split(key, 4)

    # 1) Default plan: auto tiling, >=2 batch blocks (2-TC sharding on v7x).
    x, w, b = make_case(keys[0], 512, 128)
    y = jax.block_until_ready(linear_net_forward(x, w, b))
    assert y.shape == (512, 1) and y.dtype == x.dtype
    assert jnp.allclose(y, ref(x, w, b), atol=1e-4, rtol=1e-4)

    # 2) Large batch tile: exercises the in-kernel row-chunked reduction path.
    x, w, b = make_case(keys[1], 1024, 256)
    y = jax.block_until_ready(linear_net_forward(x, w, b, block_b=1024))
    assert jnp.allclose(y, ref(x, w, b), atol=1e-4, rtol=1e-4)

    # 3) Feature-tiled accumulation with a ragged last feature block (mask path).
    x, w, b = make_case(keys[2], 512, 640)
    y = jax.block_until_ready(linear_net_forward(x, w, b, block_b=512, block_f=256))
    assert jnp.allclose(y, ref(x, w, b), atol=1e-4, rtol=1e-4)

    # 4) bf16 activations: halves the HBM bytes the kernel is bound on.
    x, w, b = make_case(keys[3], 256, 128, dtype=jnp.bfloat16)
    y = jax.block_until_ready(linear_net_forward(x, w, b))
    assert y.dtype == jnp.bfloat16
    assert jnp.allclose(y.astype(jnp.float32), ref(x, w, b), atol=3e-2, rtol=3e-2)

    print("KERNEL_OK")
</pallas_src>

<mosaic_0001>
module attributes {stable_mosaic.version = 11 : i64} {
  func.func @_linear_kernel(%arg0: i32, %arg1: i32, %arg2: memref<256x128xf32, #tpu.memory_space<vmem>>, %arg3: memref<1x128xf32, #tpu.memory_space<vmem>>, %arg4: memref<1x1xf32, #tpu.memory_space<smem>>, %arg5: memref<256x1xf32, #tpu.memory_space<vmem>>, %arg6: memref<256x1xf32, #tpu.memory_space<vmem>>) attributes {dimension_semantics = [#tpu.dimension_semantics<parallel>, #tpu.dimension_semantics<arbitrary>], iteration_bounds = array<i64: 2, 1>, scalar_prefetch = 0 : i64, scratch_operands = 1 : i64, tpu.core_type = #tpu.core_type<tc>, window_params = [{transform_indices = @transform_0, window_bounds = array<i64: 256, 128>}, {transform_indices = @transform_1, window_bounds = array<i64: 1, 128>}, {transform_indices = @transform_2, window_bounds = array<i64: 1, 1>}, {transform_indices = @transform_3, window_bounds = array<i64: 256, 1>}]} {
    %c0_i32 = arith.constant 0 : i32
    %0 = arith.cmpi eq, %arg1, %c0_i32 : i32
    %1 = arith.extui %0 : i1 to i32
    %c0_i32_0 = arith.constant 0 : i32
    %2 = arith.cmpi ne, %1, %c0_i32_0 : i32
    scf.if %2 {
      %cst_10 = arith.constant 0.000000e+00 : f32
      %15 = vector.broadcast %cst_10 : f32 to vector<256x1xf32>
      %c0_11 = arith.constant 0 : index
      %c0_12 = arith.constant 0 : index
      %16 = vector.load %arg6[%c0_11, %c0_12] : memref<256x1xf32, #tpu.memory_space<vmem>>, vector<256x1xf32>
      tpu.vector_store %arg6[%c0_11, %c0_12], %15 {strides = array<i32>} : memref<256x1xf32, #tpu.memory_space<vmem>>, vector<256x1xf32>,
    } else {
    }
    %c0 = arith.constant 0 : index
    %c0_1 = arith.constant 0 : index
    %3 = vector.load %arg3[%c0, %c0_1] : memref<1x128xf32, #tpu.memory_space<vmem>>, vector<1x128xf32>
    %c0_2 = arith.constant 0 : index
    %c0_3 = arith.constant 0 : index
    %4 = vector.load %arg6[%c0_2, %c0_3] : memref<256x1xf32, #tpu.memory_space<vmem>>, vector<256x1xf32>
    %c0_4 = arith.constant 0 : index
    %c0_5 = arith.constant 0 : index
    %5 = vector.load %arg2[%c0_4, %c0_5] : memref<256x128xf32, #tpu.memory_space<vmem>>, vector<256x128xf32>
    %6 = vector.broadcast %3 : vector<1x128xf32> to vector<256x128xf32>
    %7 = arith.mulf %5, %6 : vector<256x128xf32>
    %cst = arith.constant dense<0.000000e+00> : vector<256xf32>
    %8 = vector.multi_reduction <add>, %7, %cst [1] : vector<256x128xf32> to vector<256xf32>
    %9 = vector.shape_cast %8 : vector<256xf32> to vector<256x1xf32>
    %10 = arith.addf %4, %9 : vector<256x1xf32>
    %c0_6 = arith.constant 0 : index
    %c0_7 = arith.constant 0 : index
    %11 = vector.load %arg6[%c0_6, %c0_7] : memref<256x1xf32, #tpu.memory_space<vmem>>, vector<256x1xf32>
    tpu.vector_store %arg6[%c0_6, %c0_7], %10 {strides = array<i32>} : memref<256x1xf32, #tpu.memory_space<vmem>>, vector<256x1xf32>,
    %c0_i32_8 = arith.constant 0 : i32
    %12 = arith.cmpi eq, %arg1, %c0_i32_8 : i32
    %13 = arith.extui %12 : i1 to i32
    %c0_i32_9 = arith.constant 0 : i32
    %14 = arith.cmpi ne, %13, %c0_i32_9 : i32
    scf.if %14 {
      %c0_10 = arith.constant 0 : index
      %c0_11 = arith.constant 0 : index
      %15 = vector.load %arg6[%c0_10, %c0_11] : memref<256x1xf32, #tpu.memory_space<vmem>>, vector<256x1xf32>
      %c0_12 = arith.constant 0 : index
      %c0_13 = arith.constant 0 : index
      %16 = memref.load %arg4[%c0_12, %c0_13] : memref<1x1xf32, #tpu.memory_space<smem>>
      %17 = vector.broadcast %16 : f32 to vector<256x1xf32>
      %18 = arith.addf %15, %17 : vector<256x1xf32>
      %c0_14 = arith.constant 0 : index
      %c0_15 = arith.constant 0 : index
      %19 = vector.load %arg5[%c0_14, %c0_15] : memref<256x1xf32, #tpu.memory_space<vmem>>, vector<256x1xf32>
      tpu.vector_store %arg5[%c0_14, %c0_15], %18 {strides = array<i32>} : memref<256x1xf32, #tpu.memory_space<vmem>>, vector<256x1xf32>,
    } else {
    }
    return
  }
  func.func @transform_0(%arg0: i32, %arg1: i32) -> (i32, i32) {
    %c0_i32 = arith.constant 0 : i32
    return %arg0, %arg1 : i32, i32
  }
  func.func @transform_1(%arg0: i32, %arg1: i32) -> (i32, i32) {
    %c0_i32 = arith.constant 0 : i32
    %c0_i32_0 = arith.constant 0 : i32
    return %c0_i32, %arg1 : i32, i32
  }
  func.func @transform_2(%arg0: i32, %arg1: i32) -> (i32, i32) {
    %c0_i32 = arith.constant 0 : i32
    %c0_i32_0 = arith.constant 0 : i32
    %c0_i32_1 = arith.constant 0 : i32
    return %c0_i32, %c0_i32_0 : i32, i32
  }
  func.func @transform_3(%arg0: i32, %arg1: i32) -> (i32, i32) {
    %c0_i32 = arith.constant 0 : i32
    %c0_i32_0 = arith.constant 0 : i32
    return %arg0, %c0_i32 : i32, i32
  }
}

</mosaic_0001>

<llo_original>
// kernel: tpu_custom_call.1
$region0: #{tpu_custom_call.1}
  #allocation0 [shape = 'u32[]', space=smem, size = 0x4, offset = 0x4, fixed_abs, tag = 'smem constant byte address 0x4 - core index']
  #allocation1 [shape = 'u32[144,128]{1,0:T(1,128)}', space=vmem, size = 0x12000, scoped, tag = 'internal scratch']
  #allocation2 [shape = 'f32[256,1]{1,0:T(8,128)}', space=vmem, size = 0x20000, scoped, tag = 'scratch operand']
  #allocation3 [shape = 'f32[1,1]{1,0:T(1,128)S(6)}', space=smem, size = 0x200, scoped, tag = 'scoped memory for tpu_custom_call.1']
  %s0 = inlined_call_operand.hbm [shape: f32[512,128], index: 0, kind: input, shape index: {}]
  %s1 = inlined_call_operand.vmem [shape: f32[1,128], index: 1, kind: input, shape index: {}]
  %s2 = inlined_call_operand.<no memory space> [shape: f32[1,1], index: 2, kind: input, shape index: {}]
  %s3 = inlined_call_operand.vmem [shape: f32[512,1], index: 3, kind: output, shape index: {}]
  %s4 = sld [smem:[#allocation0]]
  $region57: #{tpu_custom_call.1} parent=0
    _
  %s6 = ssub.s32 1, %s4
  %s7 = scalar_select 0, %s6, %s4
  %8 = sst [smem:[#allocation3]] %s2
  $region1: #{tpu_custom_call.1} parent=0
    #allocation4 [shape = 'u8[262144]{0}', space=vmem, size = 0x40000, scoped, tag = 'input window, operand 0']
    #allocation5 [shape = 's32[2]{0}', space=sflag, size = 0x8, scoped, tag = 'scoped memory for tpu_custom_call.1']
    %9 = vsyncpa [#allocation5], 0
    %s10 = scalar_lea.sflag [#allocation5], 1
    %11 = vsyncpa %s10, 0
    loop: start=0, step=1, limit=4
    $region2: #{tpu_custom_call.1} parent=1 // loop_pre_header
      _
    $region3: #{tpu_custom_call.1} parent=1 // loop_header
      %s13 = sphi 0, %s17
      %p14 = scmp.ge.s32.totalorder %s13, 4
      %s20 = sphi 0, %s32
      %s21 = sphi 0, %s28
      %s22 = sphi 0, %s20
      %s23 = sphi 0, %s21
      %s24 = sphi 0, %s22
      %s25 = sphi 0, %s23
      %s37 = sphi 0, %s39
      %s40 = sphi 0, %s37
      %s41 = sphi 0, %s40
      %s57 = sphi 0, %s41
      %s63 = sphi 0, %s65
      %s66 = sphi 0, %s63
      %s67 = sphi 0, %s66
      %s83 = sphi 0, %s67
      %s87 = sphi 0, %s87
      %s89 = sphi 0, %s87
      %s90 = sphi 0, %s89
      %s104 = sphi 0, %s90
      %s110 = sphi 0, %s112
      %s113 = sphi 0, %s110
      %s114 = sphi 0, %s113
      %s130 = sphi 0, %s114
    $region4: #{tpu_custom_call.1} parent=1 // loop_header_branch
      %16 = sbr.rel (%p14) target = $region8
    $region5: #{tpu_custom_call.1} parent=1 // loop_body
      %s18 = ssub.s32 %s13, 1
      %s19 = ssub.s32 %s13, 2
      %s26 = sadd.s32 1, %s21
      %p27 = scmp.ge.s32.totalorder %s26, 1
      %s28 = scalar_select %p27, 0, %s26
      %s29 = sadd.s32 1, %s20
      %s30 = scalar_select %p27, %s29, %s20
      %p31 = scmp.ge.s32.totalorder %s30, 2
      %s32 = scalar_select %p31, 0, %s30
      %s33 = ssub.s32 %s20, %s32
      %s34 = ssub.s32 %s21, %s28
      %s35 = sor.u32 %s33, %s34
      %p36 = scmp.eq.s32.totalorder %s35, 0
      %s38 = sadd.s32 %s37, 1
      %s39 = scalar_select %p36, %s37, %s38
      %p42 = pneg %p36
      %p43 = scmp.eq.s32.totalorder %s13, 1
      %p44 = por %p42, %p43
      %p45 = scmp.ne.s32.totalorder %s37, %s40
      %p46 = scmp.eq.s32.totalorder %s13, 0
      %p47 = por %p45, %p46
      %p48 = scmp.ne.s32.totalorder %s37, %s40
      %p49 = scmp.eq.s32.totalorder %s18, 1
      %p50 = por %p48, %p49
      %p51 = scmp.ne.s32.totalorder %s40, %s41
      %p52 = scmp.eq.s32.totalorder %s18, 0
      %p53 = por %p51, %p52
      %p54 = scmp.ne.s32.totalorder %s40, %s41
      %p55 = scmp.eq.s32.totalorder %s19, 1
      %p56 = por %p54, %p55
      %p58 = scmp.ne.s32.totalorder %s41, %s57
      %p59 = scmp.eq.s32.totalorder %s19, 0
      %p60 = por %p58, %p59
      %s61 = ssub.s32 %s21, %s28
      %p62 = scmp.eq.s32.totalorder %s61, 0
      %s64 = sadd.s32 %s63, 1
      %s65 = scalar_select %p62, %s63, %s64
      %p68 = pneg %p62
      %p69 = scmp.eq.s32.totalorder %s13, 1
      %p70 = por %p68, %p69
      %p71 = scmp.ne.s32.totalorder %s63, %s66
      %p72 = scmp.eq.s32.totalorder %s13, 0
      %p73 = por %p71, %p72
      %p74 = scmp.ne.s32.totalorder %s63, %s66
      %p75 = scmp.eq.s32.totalorder %s18, 1
      %p76 = por %p74, %p75
      %p77 = scmp.ne.s32.totalorder %s66, %s67
      %p78 = scmp.eq.s32.totalorder %s18, 0
      %p79 = por %p77, %p78
      %p80 = scmp.ne.s32.totalorder %s66, %s67
      %p81 = scmp.eq.s32.totalorder %s19, 1
      %p82 = por %p80, %p81
      %p84 = scmp.ne.s32.totalorder %s67, %s83
      %p85 = scmp.eq.s32.totalorder %s19, 0
      %p86 = por %p84, %p85
      %s88 = sadd.s32 %s87, 1
      %p91 = scmp.eq.s32.totalorder %s13, 1
      %p92 = scmp.ne.s32.totalorder %s87, %s89
      %p93 = scmp.eq.s32.totalorder %s13, 0
      %p94 = por %p92, %p93
      %p95 = scmp.ne.s32.totalorder %s87, %s89
      %p96 = scmp.eq.s32.totalorder %s18, 1
      %p97 = por %p95, %p96
      %p98 = scmp.ne.s32.totalorder %s89, %s90
      %p99 = scmp.eq.s32.totalorder %s18, 0
      %p100 = por %p98, %p99
      %p101 = scmp.ne.s32.totalorder %s89, %s90
      %p102 = scmp.eq.s32.totalorder %s19, 1
      %p103 = por %p101, %p102
      %p105 = scmp.ne.s32.totalorder %s90, %s104
      %p106 = scmp.eq.s32.totalorder %s19, 0
      %p107 = por %p105, %p106
      %s108 = ssub.s32 %s20, %s32
      %p109 = scmp.eq.s32.totalorder %s108, 0
      %s111 = sadd.s32 %s110, 1
      %s112 = scalar_select %p109, %s110, %s111
      %p115 = pneg %p109
      %p116 = scmp.eq.s32.totalorder %s13, 1
      %p117 = por %p115, %p116
      %p118 = scmp.ne.s32.totalorder %s110, %s113
      %p119 = scmp.eq.s32.totalorder %s13, 0
      %p120 = por %p118, %p119
      %p121 = scmp.ne.s32.totalorder %s110, %s113
      %p122 = scmp.eq.s32.totalorder %s18, 1
      %p123 = por %p121, %p122
      %p124 = scmp.ne.s32.totalorder %s113, %s114
      %p125 = scmp.eq.s32.totalorder %s18, 0
      %p126 = por %p124, %p125
      %p127 = scmp.ne.s32.totalorder %s113, %s114
      %p128 = scmp.eq.s32.totalorder %s19, 1
      %p129 = por %p127, %p128
      %p131 = scmp.ne.s32.totalorder %s114, %s130
      %p132 = scmp.eq.s32.totalorder %s19, 0
      %p133 = por %p131, %p132
      %p134 = scmp.le.s32.totalorder 1, %s13
      %p135 = scmp.lt.s32.totalorder %s13, 3
      %p136 = pnand %p134, %p135
      %p137 = pneg %p136
      // Predicated region
      $region9: #{tpu_custom_call.1} parent=5 // pred_check
        _
      $region10: #{tpu_custom_call.1} parent=5 // pred_check_branch
        %139 = sbr.rel (%p136) target = $region12
      $region11: #{tpu_custom_call.1} parent=5 // pred_region
        %s140 = ssub.s32 %s13, 1
        // Predicated region
        $region13: #{tpu_custom_call.1} parent=11 // pred_check
          %p141 = pneg %p79
        $region14: #{tpu_custom_call.1} parent=11 // pred_check_branch
          %143 = sbr.rel (%p141) target = $region16
        $region15: #{tpu_custom_call.1} parent=11 // pred_region
          %p144 = scmp.lt.s32.totalorder %s23, 0
          %s145 = scalar_select %p144, %s23, 0
          %s146 = scalar_lea.vmem %s1, %s145
        $region16: #{tpu_custom_call.1} parent=11 // pred_fallthru
          _
        // Predicated region
        $region17: #{tpu_custom_call.1} parent=11 // pred_check
          %p147 = pneg %p100
        $region18: #{tpu_custom_call.1} parent=11 // pred_check_branch
          %149 = sbr.rel (%p147) target = $region20
        $region19: #{tpu_custom_call.1} parent=11 // pred_region
          _
        $region20: #{tpu_custom_call.1} parent=11 // pred_fallthru
          _
      $region12: #{tpu_custom_call.1} parent=5 // pred_fallthru
        _
      %p150 = scmp.lt.s32.totalorder %s13, 2
      // Predicated region
      $region21: #{tpu_custom_call.1} parent=5 // pred_check
        %p151 = pneg %p150
      $region22: #{tpu_custom_call.1} parent=5 // pred_check_branch
        %153 = sbr.rel (%p151) target = $region24
      $region23: #{tpu_custom_call.1} parent=5 // pred_region
        // Predicated region
        $region25: #{tpu_custom_call.1} parent=23 // pred_check
          %p154 = pneg %p47
        $region26: #{tpu_custom_call.1} parent=23 // pred_check_branch
          %156 = sbr.rel (%p154) target = $region28
        $region27: #{tpu_custom_call.1} parent=23 // pred_region
          %s157 = sand.u32 %s37, 1
          %s158 = scalar_lea.sflag [#allocation5], %s157
          %s159 = sand.u32 %s37, 1
          %s160 = smul.addr %s159, 256
          %s161 = scalar_lea.vmem [#allocation4], %s160
          %s162 = smul.u32 32, %s20
          %s164 = ssub.s32 4096, 4096
          %165 = vsyncadd %s158, %s164
          %s166 = sadd.s32 %s21, %s162
          %s167 = smul.addr %s166, 128
          %s168 = scalar_lea.hbm %s0, %s167
          %s169 = sshll.u32 %s161, 4
          %s170 = int_to_ptr.vmem [resolvable:$true] %s169
          %175 = dma.hbm_to_vmem [thread:$0]  %s168, 4096, %s170, %s158, 128, 128, 8
        $region28: #{tpu_custom_call.1} parent=23 // pred_fallthru
          _
      $region24: #{tpu_custom_call.1} parent=5 // pred_fallthru
        _
      %p176 = scmp.le.s32.totalorder 1, %s13
      %p177 = scmp.lt.s32.totalorder %s13, 3
      %p178 = pnand %p176, %p177
      %p179 = pneg %p178
      // Predicated region
      $region29: #{tpu_custom_call.1} parent=5 // pred_check
        _
      $region30: #{tpu_custom_call.1} parent=5 // pred_check_branch
        %181 = sbr.rel (%p178) target = $region32
      $region31: #{tpu_custom_call.1} parent=5 // pred_region
        %s182 = ssub.s32 %s13, 1
        %s183 = sand.u32 %s40, 1
        %s184 = scalar_lea.sflag [#allocation5], %s183
        %s185 = sand.u32 %s40, 1
        %s186 = smul.addr %s185, 256
        %s187 = scalar_lea.vmem [#allocation4], %s186
        // Predicated region
        $region33: #{tpu_custom_call.1} parent=31 // pred_check
          %p188 = pneg %p53
        $region34: #{tpu_custom_call.1} parent=31 // pred_check_branch
          %190 = sbr.rel (%p188) target = $region36
        $region35: #{tpu_custom_call.1} parent=31 // pred_region
          %191 = dma.done %s184, 4096
        $region36: #{tpu_custom_call.1} parent=31 // pred_fallthru
          _
        %s192 = sand.u32 %s40, 1
        %s193 = scalar_lea.sflag [#allocation5], %s192
        %s194 = sand.u32 %s40, 1
        %s195 = smul.addr %s194, 256
        %s196 = scalar_lea.vmem [#allocation4], %s195
        %p197 = pneg %p53
        %p198 = pneg %p50
        %p199 = scmp.lt.s32.totalorder %s23, 0
        %s200 = scalar_select %p199, %s23, 0
        %s201 = scalar_lea.vmem %s1, %s200
        %p202 = pneg %p79
        %p203 = pneg %p76
        %p204 = pneg %p100
        %p205 = pneg %p97
        %p206 = pneg %p126
        %p207 = pneg %p123
        %s208 = smul.u32 32, %s22
        %p209 = scmp.lt.s32.totalorder %s208, 63
        %s210 = scalar_select %p209, %s208, 63
        %s211 = smul.addr %s210, 8
        %s212 = scalar_lea.vmem %s3, %s211
        %s213 = smul.u32 32, %s22
        %p214 = scmp.lt.s32.totalorder %s23, 0
        %s215 = scalar_select %p214, %s23, 0
        %s216 = scalar_lea.vmem %s1, %s215
        %s217 = smul.u32 32, %s22
        %p218 = scmp.lt.s32.totalorder %s217, 63
        %s219 = scalar_select %p218, %s217, 63
        %s220 = smul.addr %s219, 8
        %s221 = scalar_lea.vmem %s3, %s220
        %s222 = smul.u32 32, %s22
        %p223 = scmp.eq.s32.totalorder %s23, 0
        // Predicated region
        $region37: #{tpu_custom_call.1} parent=31 // pred_check
          %p224 = pneg %p223
        $region38: #{tpu_custom_call.1} parent=31 // pred_check_branch
          %226 = sbr.rel (%p224) target = $region40
        $region39: #{tpu_custom_call.1} parent=31 // pred_region
          %vm227 = vcmask 7168
          %228 = vst.msk [vmem:[#allocation2] sm:$0xff] %vm227, 0.0
          %229 = vst.msk [vmem:[#allocation2 + $0x8] sm:$0xff] %vm227, 0.0
          %230 = vst.msk [vmem:[#allocation2 + $0x10] sm:$0xff] %vm227, 0.0
          %231 = vst.msk [vmem:[#allocation2 + $0x18] sm:$0xff] %vm227, 0.0
          %232 = vst.msk [vmem:[#allocation2 + $0x20] sm:$0xff] %vm227, 0.0
          %233 = vst.msk [vmem:[#allocation2 + $0x28] sm:$0xff] %vm227, 0.0
          %234 = vst.msk [vmem:[#allocation2 + $0x30] sm:$0xff] %vm227, 0.0
          %235 = vst.msk [vmem:[#allocation2 + $0x38] sm:$0xff] %vm227, 0.0
          %236 = vst.msk [vmem:[#allocation2 + $0x40] sm:$0xff] %vm227, 0.0
          %237 = vst.msk [vmem:[#allocation2 + $0x48] sm:$0xff] %vm227, 0.0
          %238 = vst.msk [vmem:[#allocation2 + $0x50] sm:$0xff] %vm227, 0.0
          %239 = vst.msk [vmem:[#allocation2 + $0x58] sm:$0xff] %vm227, 0.0
          %240 = vst.msk [vmem:[#allocation2 + $0x60] sm:$0xff] %vm227, 0.0
          %241 = vst.msk [vmem:[#allocation2 + $0x68] sm:$0xff] %vm227, 0.0
          %242 = vst.msk [vmem:[#allocation2 + $0x70] sm:$0xff] %vm227, 0.0
          %243 = vst.msk [vmem:[#allocation2 + $0x78] sm:$0xff] %vm227, 0.0
          %244 = vst.msk [vmem:[#allocation2 + $0x80] sm:$0xff] %vm227, 0.0
          %245 = vst.msk [vmem:[#allocation2 + $0x88] sm:$0xff] %vm227, 0.0
          %246 = vst.msk [vmem:[#allocation2 + $0x90] sm:$0xff] %vm227, 0.0
          %247 = vst.msk [vmem:[#allocation2 + $0x98] sm:$0xff] %vm227, 0.0
          %248 = vst.msk [vmem:[#allocation2 + $0xa0] sm:$0xff] %vm227, 0.0
          %249 = vst.msk [vmem:[#allocation2 + $0xa8] sm:$0xff] %vm227, 0.0
          %250 = vst.msk [vmem:[#allocation2 + $0xb0] sm:$0xff] %vm227, 0.0
          %251 = vst.msk [vmem:[#allocation2 + $0xb8] sm:$0xff] %vm227, 0.0
          %252 = vst.msk [vmem:[#allocation2 + $0xc0] sm:$0xff] %vm227, 0.0
          %253 = vst.msk [vmem:[#allocation2 + $0xc8] sm:$0xff] %vm227, 0.0
          %254 = vst.msk [vmem:[#allocation2 + $0xd0] sm:$0xff] %vm227, 0.0
          %255 = vst.msk [vmem:[#allocation2 + $0xd8] sm:$0xff] %vm227, 0.0
          %256 = vst.msk [vmem:[#allocation2 + $0xe0] sm:$0xff] %vm227, 0.0
          %257 = vst.msk [vmem:[#allocation2 + $0xe8] sm:$0xff] %vm227, 0.0
          %258 = vst.msk [vmem:[#allocation2 + $0xf0] sm:$0xff] %vm227, 0.0
          %259 = vst.msk [vmem:[#allocation2 + $0xf8] sm:$0xff] %vm227, 0.0
        $region40: #{tpu_custom_call.1} parent=31 // pred_fallthru
          _
        %v260 = vld [vmem:[%s216] sm:$0x1]
        %v261 = vld [vmem:[#allocation2] sm:$0xff]
        %v262 = vld [vmem:[#allocation2 + $0x8] sm:$0xff]
        %v263 = vld [vmem:[#allocation2 + $0x10] sm:$0xff]
        %v264 = vld [vmem:[#allocation2 + $0x18] sm:$0xff]
        %v265 = vld [vmem:[#allocation2 + $0x20] sm:$0xff]
        %v266 = vld [vmem:[#allocation2 + $0x28] sm:$0xff]
        %v267 = vld [vmem:[#allocation2 + $0x30] sm:$0xff]
        %v268 = vld [vmem:[#allocation2 + $0x38] sm:$0xff]
        %v269 = vld [vmem:[#allocation2 + $0x40] sm:$0xff]
        %v270 = vld [vmem:[#allocation2 + $0x48] sm:$0xff]
        %v271 = vld [vmem:[#allocation2 + $0x50] sm:$0xff]
        %v272 = vld [vmem:[#allocation2 + $0x58] sm:$0xff]
        %v273 = vld [vmem:[#allocation2 + $0x60] sm:$0xff]
        %v274 = vld [vmem:[#allocation2 + $0x68] sm:$0xff]
        %v275 = vld [vmem:[#allocation2 + $0x70] sm:$0xff]
        %v276 = vld [vmem:[#allocation2 + $0x78] sm:$0xff]
        %v277 = vld [vmem:[#allocation2 + $0x80] sm:$0xff]
        %v278 = vld [vmem:[#allocation2 + $0x88] sm:$0xff]
        %v279 = vld [vmem:[#allocation2 + $0x90] sm:$0xff]
        %v280 = vld [vmem:[#allocation2 + $0x98] sm:$0xff]
        %v281 = vld [vmem:[#allocation2 + $0xa0] sm:$0xff]
        %v282 = vld [vmem:[#allocation2 + $0xa8] sm:$0xff]
        %v283 = vld [vmem:[#allocation2 + $0xb0] sm:$0xff]
        %v284 = vld [vmem:[#allocation2 + $0xb8] sm:$0xff]
        %v285 = vld [vmem:[#allocation2 + $0xc0] sm:$0xff]
        %v286 = vld [vmem:[#allocation2 + $0xc8] sm:$0xff]
        %v287 = vld [vmem:[#allocation2 + $0xd0] sm:$0xff]
        %v288 = vld [vmem:[#allocation2 + $0xd8] sm:$0xff]
        %v289 = vld [vmem:[#allocation2 + $0xe0] sm:$0xff]
        %v290 = vld [vmem:[#allocation2 + $0xe8] sm:$0xff]
        %v291 = vld [vmem:[#allocation2 + $0xf0] sm:$0xff]
        %v292 = vld [vmem:[#allocation2 + $0xf8] sm:$0xff]
        %v293 = vld [vmem:[%s187] sm:$0xff]
        %v294 = vld [vmem:[%s187 + $0x8] sm:$0xff]
        %v295 = vld [vmem:[%s187 + $0x10] sm:$0xff]
        %v296 = vld [vmem:[%s187 + $0x18] sm:$0xff]
        %v297 = vld [vmem:[%s187 + $0x20] sm:$0xff]
        %v298 = vld [vmem:[%s187 + $0x28] sm:$0xff]
        %v299 = vld [vmem:[%s187 + $0x30] sm:$0xff]
        %v300 = vld [vmem:[%s187 + $0x38] sm:$0xff]
        %v301 = vld [vmem:[%s187 + $0x40] sm:$0xff]
        %v302 = vld [vmem:[%s187 + $0x48] sm:$0xff]
        %v303 = vld [vmem:[%s187 + $0x50] sm:$0xff]
        %v304 = vld [vmem:[%s187 + $0x58] sm:$0xff]
        %v305 = vld [vmem:[%s187 + $0x60] sm:$0xff]
        %v306 = vld [vmem:[%s187 + $0x68] sm:$0xff]
        %v307 = vld [vmem:[%s187 + $0x70] sm:$0xff]
        %v308 = vld [vmem:[%s187 + $0x78] sm:$0xff]
        %v309 = vld [vmem:[%s187 + $0x80] sm:$0xff]
        %v310 = vld [vmem:[%s187 + $0x88] sm:$0xff]
        %v311 = vld [vmem:[%s187 + $0x90] sm:$0xff]
        %v312 = vld [vmem:[%s187 + $0x98] sm:$0xff]
        %v313 = vld [vmem:[%s187 + $0xa0] sm:$0xff]
        %v314 = vld [vmem:[%s187 + $0xa8] sm:$0xff]
        %v315 = vld [vmem:[%s187 + $0xb0] sm:$0xff]
        %v316 = vld [vmem:[%s187 + $0xb8] sm:$0xff]
        %v317 = vld [vmem:[%s187 + $0xc0] sm:$0xff]
        %v318 = vld [vmem:[%s187 + $0xc8] sm:$0xff]
        %v319 = vld [vmem:[%s187 + $0xd0] sm:$0xff]
        %v320 = vld [vmem:[%s187 + $0xd8] sm:$0xff]
        %v321 = vld [vmem:[%s187 + $0xe0] sm:$0xff]
        %v322 = vld [vmem:[%s187 + $0xe8] sm:$0xff]
        %v323 = vld [vmem:[%s187 + $0xf0] sm:$0xff]
        %v324 = vld [vmem:[%s187 + $0xf8] sm:$0xff]
        %v326 = vlaneseq
        %v327 = vshrl.u32 %v326, 7
        %v328 = vsub.s32 0, %v327
        %v329 = vrot.slane %v260, %v328
        %v331 = vmul.f32 %v293, %v329
        %v332 = vmul.f32 %v294, %v329
        %v333 = vmul.f32 %v295, %v329
        %v334 = vmul.f32 %v296, %v329
        %v335 = vmul.f32 %v297, %v329
        %v336 = vmul.f32 %v298, %v329
        %v337 = vmul.f32 %v299, %v329
        %v338 = vmul.f32 %v300, %v329
        %v339 = vmul.f32 %v301, %v329
        %v340 = vmul.f32 %v302, %v329
        %v341 = vmul.f32 %v303, %v329
        %v342 = vmul.f32 %v304, %v329
        %v343 = vmul.f32 %v305, %v329
        %v344 = vmul.f32 %v306, %v329
        %v345 = vmul.f32 %v307, %v329
        %v346 = vmul.f32 %v308, %v329
        %v347 = vmul.f32 %v309, %v329
        %v348 = vmul.f32 %v310, %v329
        %v349 = vmul.f32 %v311, %v329
        %v350 = vmul.f32 %v312, %v329
        %v351 = vmul.f32 %v313, %v329
        %v352 = vmul.f32 %v314, %v329
        %v353 = vmul.f32 %v315, %v329
        %v354 = vmul.f32 %v316, %v329
        %v355 = vmul.f32 %v317, %v329
        %v356 = vmul.f32 %v318, %v329
        %v357 = vmul.f32 %v319, %v329
        %v358 = vmul.f32 %v320, %v329
        %v359 = vmul.f32 %v321, %v329
        %v360 = vmul.f32 %v322, %v329
        %v361 = vmul.f32 %v323, %v329
        %v362 = vmul.f32 %v324, %v329
        %363 = vadd.xlane.f32.xlu0 %v331
        %v364 = vpop.xlane.xlu0 %363
        %365 = vadd.xlane.f32.xlu0 %v332
        %v366 = vpop.xlane.xlu0 %365
        %367 = vadd.xlane.f32.xlu0 %v333
        %v368 = vpop.xlane.xlu0 %367
        %369 = vadd.xlane.f32.xlu0 %v334
        %v370 = vpop.xlane.xlu0 %369
        %371 = vadd.xlane.f32.xlu0 %v335
        %v372 = vpop.xlane.xlu0 %371
        %373 = vadd.xlane.f32.xlu0 %v336
        %v374 = vpop.xlane.xlu0 %373
        %375 = vadd.xlane.f32.xlu0 %v337
        %v376 = vpop.xlane.xlu0 %375
        %377 = vadd.xlane.f32.xlu0 %v338
        %v378 = vpop.xlane.xlu0 %377
        %379 = vadd.xlane.f32.xlu0 %v339
        %v380 = vpop.xlane.xlu0 %379
        %381 = vadd.xlane.f32.xlu0 %v340
        %v382 = vpop.xlane.xlu0 %381
        %383 = vadd.xlane.f32.xlu0 %v341
        %v384 = vpop.xlane.xlu0 %383
        %385 = vadd.xlane.f32.xlu0 %v342
        %v386 = vpop.xlane.xlu0 %385
        %387 = vadd.xlane.f32.xlu0 %v343
        %v388 = vpop.xlane.xlu0 %387
        %389 = vadd.xlane.f32.xlu0 %v344
        %v390 = vpop.xlane.xlu0 %389
        %391 = vadd.xlane.f32.xlu0 %v345
        %v392 = vpop.xlane.xlu0 %391
        %393 = vadd.xlane.f32.xlu0 %v346
        %v394 = vpop.xlane.xlu0 %393
        %395 = vadd.xlane.f32.xlu0 %v347
        %v396 = vpop.xlane.xlu0 %395
        %397 = vadd.xlane.f32.xlu0 %v348
        %v398 = vpop.xlane.xlu0 %397
        %399 = vadd.xlane.f32.xlu0 %v349
        %v400 = vpop.xlane.xlu0 %399
        %401 = vadd.xlane.f32.xlu0 %v350
        %v402 = vpop.xlane.xlu0 %401
        %403 = vadd.xlane.f32.xlu0 %v351
        %v404 = vpop.xlane.xlu0 %403
        %405 = vadd.xlane.f32.xlu0 %v352
        %v406 = vpop.xlane.xlu0 %405
        %407 = vadd.xlane.f32.xlu0 %v353
        %v408 = vpop.xlane.xlu0 %407
        %409 = vadd.xlane.f32.xlu0 %v354
        %v410 = vpop.xlane.xlu0 %409
        %411 = vadd.xlane.f32.xlu0 %v355
        %v412 = vpop.xlane.xlu0 %411
        %413 = vadd.xlane.f32.xlu0 %v356
        %v414 = vpop.xlane.xlu0 %413
        %415 = vadd.xlane.f32.xlu0 %v357
        %v416 = vpop.xlane.xlu0 %415
        %417 = vadd.xlane.f32.xlu0 %v358
        %v418 = vpop.xlane.xlu0 %417
        %419 = vadd.xlane.f32.xlu0 %v359
        %v420 = vpop.xlane.xlu0 %419
        %421 = vadd.xlane.f32.xlu0 %v360
        %v422 = vpop.xlane.xlu0 %421
        %423 = vadd.xlane.f32.xlu0 %v361
        %v424 = vpop.xlane.xlu0 %423
        %425 = vadd.xlane.f32.xlu0 %v362
        %v426 = vpop.xlane.xlu0 %425
        %v427 = vadd.f32 %v261, %v364
        %v428 = vadd.f32 %v262, %v366
        %v429 = vadd.f32 %v263, %v368
        %v430 = vadd.f32 %v264, %v370
        %v431 = vadd.f32 %v265, %v372
        %v432 = vadd.f32 %v266, %v374
        %v433 = vadd.f32 %v267, %v376
        %v434 = vadd.f32 %v268, %v378
        %v435 = vadd.f32 %v269, %v380
        %v436 = vadd.f32 %v270, %v382
        %v437 = vadd.f32 %v271, %v384
        %v438 = vadd.f32 %v272, %v386
        %v439 = vadd.f32 %v273, %v388
        %v440 = vadd.f32 %v274, %v390
        %v441 = vadd.f32 %v275, %v392
        %v442 = vadd.f32 %v276, %v394
        %v443 = vadd.f32 %v277, %v396
        %v444 = vadd.f32 %v278, %v398
        %v445 = vadd.f32 %v279, %v400
        %v446 = vadd.f32 %v280, %v402
        %v447 = vadd.f32 %v281, %v404
        %v448 = vadd.f32 %v282, %v406
        %v449 = vadd.f32 %v283, %v408
        %v450 = vadd.f32 %v284, %v410
        %v451 = vadd.f32 %v285, %v412
        %v452 = vadd.f32 %v286, %v414
        %v453 = vadd.f32 %v287, %v416
        %v454 = vadd.f32 %v288, %v418
        %v455 = vadd.f32 %v289, %v420
        %v456 = vadd.f32 %v290, %v422
        %v457 = vadd.f32 %v291, %v424
        %v458 = vadd.f32 %v292, %v426
        %vm459 = vcmask 7168
        %460 = vst.msk [vmem:[#allocation2] sm:$0xff] %vm459, %v427
        %461 = vst.msk [vmem:[#allocation2 + $0x8] sm:$0xff] %vm459, %v428
        %462 = vst.msk [vmem:[#allocation2 + $0x10] sm:$0xff] %vm459, %v429
        %463 = vst.msk [vmem:[#allocation2 + $0x18] sm:$0xff] %vm459, %v430
        %464 = vst.msk [vmem:[#allocation2 + $0x20] sm:$0xff] %vm459, %v431
        %465 = vst.msk [vmem:[#allocation2 + $0x28] sm:$0xff] %vm459, %v432
        %466 = vst.msk [vmem:[#allocation2 + $0x30] sm:$0xff] %vm459, %v433
        %467 = vst.msk [vmem:[#allocation2 + $0x38] sm:$0xff] %vm459, %v434
        %468 = vst.msk [vmem:[#allocation2 + $0x40] sm:$0xff] %vm459, %v435
        %469 = vst.msk [vmem:[#allocation2 + $0x48] sm:$0xff] %vm459, %v436
        %470 = vst.msk [vmem:[#allocation2 + $0x50] sm:$0xff] %vm459, %v437
        %471 = vst.msk [vmem:[#allocation2 + $0x58] sm:$0xff] %vm459, %v438
        %472 = vst.msk [vmem:[#allocation2 + $0x60] sm:$0xff] %vm459, %v439
        %473 = vst.msk [vmem:[#allocation2 + $0x68] sm:$0xff] %vm459, %v440
        %474 = vst.msk [vmem:[#allocation2 + $0x70] sm:$0xff] %vm459, %v441
        %475 = vst.msk [vmem:[#allocation2 + $0x78] sm:$0xff] %vm459, %v442
        %476 = vst.msk [vmem:[#allocation2 + $0x80] sm:$0xff] %vm459, %v443
        %477 = vst.msk [vmem:[#allocation2 + $0x88] sm:$0xff] %vm459, %v444
        %478 = vst.msk [vmem:[#allocation2 + $0x90] sm:$0xff] %vm459, %v445
        %479 = vst.msk [vmem:[#allocation2 + $0x98] sm:$0xff] %vm459, %v446
        %480 = vst.msk [vmem:[#allocation2 + $0xa0] sm:$0xff] %vm459, %v447
        %481 = vst.msk [vmem:[#allocation2 + $0xa8] sm:$0xff] %vm459, %v448
        %482 = vst.msk [vmem:[#allocation2 + $0xb0] sm:$0xff] %vm459, %v449
        %483 = vst.msk [vmem:[#allocation2 + $0xb8] sm:$0xff] %vm459, %v450
        %484 = vst.msk [vmem:[#allocation2 + $0xc0] sm:$0xff] %vm459, %v451
        %485 = vst.msk [vmem:[#allocation2 + $0xc8] sm:$0xff] %vm459, %v452
        %486 = vst.msk [vmem:[#allocation2 + $0xd0] sm:$0xff] %vm459, %v453
        %487 = vst.msk [vmem:[#allocation2 + $0xd8] sm:$0xff] %vm459, %v454
        %488 = vst.msk [vmem:[#allocation2 + $0xe0] sm:$0xff] %vm459, %v455
        %489 = vst.msk [vmem:[#allocation2 + $0xe8] sm:$0xff] %vm459, %v456
        %490 = vst.msk [vmem:[#allocation2 + $0xf0] sm:$0xff] %vm459, %v457
        %491 = vst.msk [vmem:[#allocation2 + $0xf8] sm:$0xff] %vm459, %v458
        // Predicated region
        $region41: #{tpu_custom_call.1} parent=31 // pred_check
          %p492 = pneg %p223
        $region42: #{tpu_custom_call.1} parent=31 // pred_check_branch
          %494 = sbr.rel (%p492) target = $region44
        $region43: #{tpu_custom_call.1} parent=31 // pred_region
          %v495 = vld [vmem:[#allocation2] sm:$0xff]
          %v496 = vld [vmem:[#allocation2 + $0x8] sm:$0xff]
          %v497 = vld [vmem:[#allocation2 + $0x10] sm:$0xff]
          %v498 = vld [vmem:[#allocation2 + $0x18] sm:$0xff]
          %v499 = vld [vmem:[#allocation2 + $0x20] sm:$0xff]
          %v500 = vld [vmem:[#allocation2 + $0x28] sm:$0xff]
          %v501 = vld [vmem:[#allocation2 + $0x30] sm:$0xff]
          %v502 = vld [vmem:[#allocation2 + $0x38] sm:$0xff]
          %v503 = vld [vmem:[#allocation2 + $0x40] sm:$0xff]
          %v504 = vld [vmem:[#allocation2 + $0x48] sm:$0xff]
          %v505 = vld [vmem:[#allocation2 + $0x50] sm:$0xff]
          %v506 = vld [vmem:[#allocation2 + $0x58] sm:$0xff]
          %v507 = vld [vmem:[#allocation2 + $0x60] sm:$0xff]
          %v508 = vld [vmem:[#allocation2 + $0x68] sm:$0xff]
          %v509 = vld [vmem:[#allocation2 + $0x70] sm:$0xff]
          %v510 = vld [vmem:[#allocation2 + $0x78] sm:$0xff]
          %v511 = vld [vmem:[#allocation2 + $0x80] sm:$0xff]
          %v512 = vld [vmem:[#allocation2 + $0x88] sm:$0xff]
          %v513 = vld [vmem:[#allocation2 + $0x90] sm:$0xff]
          %v514 = vld [vmem:[#allocation2 + $0x98] sm:$0xff]
          %v515 = vld [vmem:[#allocation2 + $0xa0] sm:$0xff]
          %v516 = vld [vmem:[#allocation2 + $0xa8] sm:$0xff]
          %v517 = vld [vmem:[#allocation2 + $0xb0] sm:$0xff]
          %v518 = vld [vmem:[#allocation2 + $0xb8] sm:$0xff]
          %v519 = vld [vmem:[#allocation2 + $0xc0] sm:$0xff]
          %v520 = vld [vmem:[#allocation2 + $0xc8] sm:$0xff]
          %v521 = vld [vmem:[#allocation2 + $0xd0] sm:$0xff]
          %v522 = vld [vmem:[#allocation2 + $0xd8] sm:$0xff]
          %v523 = vld [vmem:[#allocation2 + $0xe0] sm:$0xff]
          %v524 = vld [vmem:[#allocation2 + $0xe8] sm:$0xff]
          %v525 = vld [vmem:[#allocation2 + $0xf0] sm:$0xff]
          %v526 = vld [vmem:[#allocation2 + $0xf8] sm:$0xff]
          %s527 = sld [smem:[#allocation3]]
          %v528 = vstv %s527
          %v529 = vadd.f32 %v495, %v528
          %v530 = vadd.f32 %v496, %v528
          %v531 = vadd.f32 %v497, %v528
          %v532 = vadd.f32 %v498, %v528
          %v533 = vadd.f32 %v499, %v528
          %v534 = vadd.f32 %v500, %v528
          %v535 = vadd.f32 %v501, %v528
          %v536 = vadd.f32 %v502, %v528
          %v537 = vadd.f32 %v503, %v528
          %v538 = vadd.f32 %v504, %v528
          %v539 = vadd.f32 %v505, %v528
          %v540 = vadd.f32 %v506, %v528
          %v541 = vadd.f32 %v507, %v528
          %v542 = vadd.f32 %v508, %v528
          %v543 = vadd.f32 %v509, %v528
          %v544 = vadd.f32 %v510, %v528
          %v545 = vadd.f32 %v511, %v528
          %v546 = vadd.f32 %v512, %v528
          %v547 = vadd.f32 %v513, %v528
          %v548 = vadd.f32 %v514, %v528
          %v549 = vadd.f32 %v515, %v528
          %v550 = vadd.f32 %v516, %v528
          %v551 = vadd.f32 %v517, %v528
          %v552 = vadd.f32 %v518, %v528
          %v553 = vadd.f32 %v519, %v528
          %v554 = vadd.f32 %v520, %v528
          %v555 = vadd.f32 %v521, %v528
          %v556 = vadd.f32 %v522, %v528
          %v557 = vadd.f32 %v523, %v528
          %v558 = vadd.f32 %v524, %v528
          %v559 = vadd.f32 %v525, %v528
          %v560 = vadd.f32 %v526, %v528
          %561 = vst.msk [vmem:[%s221] sm:$0xff] %vm459, %v529
          %562 = vst.msk [vmem:[%s221 + $0x8] sm:$0xff] %vm459, %v530
          %563 = vst.msk [vmem:[%s221 + $0x10] sm:$0xff] %vm459, %v531
          %564 = vst.msk [vmem:[%s221 + $0x18] sm:$0xff] %vm459, %v532
          %565 = vst.msk [vmem:[%s221 + $0x20] sm:$0xff] %vm459, %v533
          %566 = vst.msk [vmem:[%s221 + $0x28] sm:$0xff] %vm459, %v534
          %567 = vst.msk [vmem:[%s221 + $0x30] sm:$0xff] %vm459, %v535
          %568 = vst.msk [vmem:[%s221 + $0x38] sm:$0xff] %vm459, %v536
          %569 = vst.msk [vmem:[%s221 + $0x40] sm:$0xff] %vm459, %v537
          %570 = vst.msk [vmem:[%s221 + $0x48] sm:$0xff] %vm459, %v538
          %571 = vst.msk [vmem:[%s221 + $0x50] sm:$0xff] %vm459, %v539
          %572 = vst.msk [vmem:[%s221 + $0x58] sm:$0xff] %vm459, %v540
          %573 = vst.msk [vmem:[%s221 + $0x60] sm:$0xff] %vm459, %v541
          %574 = vst.msk [vmem:[%s221 + $0x68] sm:$0xff] %vm459, %v542
          %575 = vst.msk [vmem:[%s221 + $0x70] sm:$0xff] %vm459, %v543
          %576 = vst.msk [vmem:[%s221 + $0x78] sm:$0xff] %vm459, %v544
          %577 = vst.msk [vmem:[%s221 + $0x80] sm:$0xff] %vm459, %v545
          %578 = vst.msk [vmem:[%s221 + $0x88] sm:$0xff] %vm459, %v546
          %579 = vst.msk [vmem:[%s221 + $0x90] sm:$0xff] %vm459, %v547
          %580 = vst.msk [vmem:[%s221 + $0x98] sm:$0xff] %vm459, %v548
          %581 = vst.msk [vmem:[%s221 + $0xa0] sm:$0xff] %vm459, %v549
          %582 = vst.msk [vmem:[%s221 + $0xa8] sm:$0xff] %vm459, %v550
          %583 = vst.msk [vmem:[%s221 + $0xb0] sm:$0xff] %vm459, %v551
          %584 = vst.msk [vmem:[%s221 + $0xb8] sm:$0xff] %vm459, %v552
          %585 = vst.msk [vmem:[%s221 + $0xc0] sm:$0xff] %vm459, %v553
          %586 = vst.msk [vmem:[%s221 + $0xc8] sm:$0xff] %vm459, %v554
          %587 = vst.msk [vmem:[%s221 + $0xd0] sm:$0xff] %vm459, %v555
          %588 = vst.msk [vmem:[%s221 + $0xd8] sm:$0xff] %vm459, %v556
          %589 = vst.msk [vmem:[%s221 + $0xe0] sm:$0xff] %vm459, %v557
          %590 = vst.msk [vmem:[%s221 + $0xe8] sm:$0xff] %vm459, %v558
          %591 = vst.msk [vmem:[%s221 + $0xf0] sm:$0xff] %vm459, %v559
          %592 = vst.msk [vmem:[%s221 + $0xf8] sm:$0xff] %vm459, %v560
        $region44: #{tpu_custom_call.1} parent=31 // pred_fallthru
          _
        %s593 = smul.u32 32, %s22
        %p594 = scmp.lt.s32.totalorder %s593, 63
        %s595 = scalar_select %p594, %s593, 63
        %s596 = smul.addr %s595, 8
        %s597 = scalar_lea.vmem %s3, %s596
        // Predicated region
        $region45: #{tpu_custom_call.1} parent=31 // pred_check
          %p598 = pneg %p123
        $region46: #{tpu_custom_call.1} parent=31 // pred_check_branch
          %600 = sbr.rel (%p598) target = $region48
        $region47: #{tpu_custom_call.1} parent=31 // pred_region
          %s601 = smul.u32 32, %s22
        $region48: #{tpu_custom_call.1} parent=31 // pred_fallthru
          _
      $region32: #{tpu_custom_call.1} parent=5 // pred_fallthru
        _
      %p602 = scmp.le.s32.totalorder 2, %s13
      // Predicated region
      $region49: #{tpu_custom_call.1} parent=5 // pred_check
        %p603 = pneg %p602
      $region50: #{tpu_custom_call.1} parent=5 // pred_check_branch
        %605 = sbr.rel (%p603) target = $region52
      $region51: #{tpu_custom_call.1} parent=5 // pred_region
        %s606 = ssub.s32 %s13, 2
        // Predicated region
        $region53: #{tpu_custom_call.1} parent=51 // pred_check
          %p607 = pneg %p129
        $region54: #{tpu_custom_call.1} parent=51 // pred_check_branch
          %609 = sbr.rel (%p607) target = $region56
        $region55: #{tpu_custom_call.1} parent=51 // pred_region
          %s610 = smul.u32 32, %s24
          %p611 = scmp.lt.s32.totalorder %s610, 63
          %s612 = scalar_select %p611, %s610, 63
          %s613 = smul.addr %s612, 8
          %s614 = scalar_lea.vmem %s3, %s613
        $region56: #{tpu_custom_call.1} parent=51 // pred_fallthru
          _
      $region52: #{tpu_custom_call.1} parent=5 // pred_fallthru
        _
    $region6: #{tpu_custom_call.1} parent=1 // loop_footer
      %s17 = sadd.s32 1, %s13
    $region7: #{tpu_custom_call.1} parent=1 // loop_footer_branch
      %12 = sbr.rel target = $region3
    $region8: #{tpu_custom_call.1} parent=1 // loop_exit
      _
    %615 = vsyncpa [#allocation5], 1
    %s616 = scalar_lea.sflag [#allocation5], 1
    %617 = vsyncpa %s616, 1

</llo_original>
